<compile_context>
chip_gen: v7x
topology: tpu7x:2x2x1
jax: 0.10.0
libtpu: 0.0.40
codegen_flags: <defaults>
</compile_context>

<pallas_src>
import functools

import jax
import jax.numpy as jnp
from jax import lax
from jax.experimental import pallas as pl
from jax.experimental.pallas import tpu as pltpu

EPS = 1e-5
_LANE = 128


def _round_up(x, d):
  return -(-x // d) * d


def _cdiv(a, b):
  return -(-a // b)


def _choose_tm(lout, max_tm=1024):
  """Largest tile <= max_tm that still leaves >= 2 M tiles (v7x has 2 TensorCores)."""
  tm = max_tm
  while tm > _LANE and tm * 2 > lout:
    tm //= 2
  return tm


def _vmem_limit_bytes():
  try:
    cap = pltpu.get_tpu_info().vmem_capacity_bytes
  except Exception:
    cap = 64 * 1024 * 1024
  return int(cap * 0.65)


@functools.lru_cache(maxsize=None)
def _roll_is_jnp_convention():
  """One-off probe of pltpu.roll's rotation direction (guards the tap-shift math)."""
  def kernel(x_ref, o_ref):
    o_ref[...] = pltpu.roll(x_ref[...], 1, 1)

  x = jnp.broadcast_to(jnp.arange(_LANE, dtype=jnp.int32), (8, _LANE))
  y = pl.pallas_call(
      kernel, out_shape=jax.ShapeDtypeStruct((8, _LANE), jnp.int32))(x)
  # jnp.roll(x, +1, axis=1) brings the last lane to lane 0.
  return bool(y[0, 0] == _LANE - 1)


# ------------------------------ Pallas kernel --------------------------------
def _convbn_kernel(offs, roll_jnp, has_res, x_ref, w_ref, b_ref, *rest):
  """One (M-tile i ["parallel"], channel-block k [reduction]) grid step.

  Computes  out = relu( sum_t W[t] @ shift(x, offs[t]) + bias [+ residual] ).

  x_ref: (1, ck, tm+halo)          w_ref: (1, ntaps, Coutp, ck)  (BN scale pre-folded)
  b_ref: (Coutp, 1) f32            res_ref (optional): (Coutp, tm)
  o_ref: (Coutp, tm)               acc_ref: (Coutp, tm) f32 scratch
  """
  if has_res:
    res_ref, o_ref, acc_ref = rest
  else:
    o_ref, acc_ref = rest
  k = pl.program_id(1)

  @pl.when(k == 0)
  def _():
    acc_ref[...] = jnp.zeros_like(acc_ref)

  x = x_ref[0]                                   # (ck, tm + halo)
  lt = x.shape[-1]
  tm = o_ref.shape[-1]

  total = None
  for t, off in enumerate(offs):
    if off == 0:
      win = x[:, :tm]
    else:
      # Left-shift the haloed row block by `off` lanes (XLU rotate, overlaps the MXU),
      # then take the lane-aligned tm-wide tile.
      shift = (lt - off) % lt if roll_jnp else off
      win = pltpu.roll(x, shift, 1)[:, :tm]
    part = jnp.dot(w_ref[0, t], win, preferred_element_type=jnp.float32)
    total = part if total is None else total + part
  acc_ref[...] += total

  @pl.when(k == pl.num_programs(1) - 1)
  def _():
    out = acc_ref[...] + b_ref[...]
    if has_res:
      out = out + res_ref[...].astype(jnp.float32)
    o_ref[...] = jnp.maximum(out, 0.0).astype(o_ref.dtype)


def _fused_conv_bn(x_rows, w_taps, bias, offs, *, residual=None,
                   out_dtype=jnp.float32, ck_max=512, max_tm=1024):
  """relu( sum_t W[:,t,:] @ shift(x_rows, offs[t]) + bias [+ residual] ).

  x_rows:   (C, L)           compute-dtype rows; lanes = flattened output positions.
  w_taps:   (Cout, ntaps, C) f32 weights with the BN scale already folded in.
  bias:     (Cout,)          f32 combined bias.
  offs:     static per-tap lane shifts into x_rows.
  residual: optional (Cout, L) added before the ReLU.
  Returns (Cout_p, Mp); the caller slices [:Cout, :L].
  """
  compute_dtype = x_rows.dtype
  c, lx = x_rows.shape
  cout, ntaps, _ = w_taps.shape

  tm = _choose_tm(lx, max_tm)
  mp = _round_up(lx, tm)
  t_tiles = mp // tm
  max_off = max(offs)
  halo = _round_up(max_off, _LANE) if max_off else 0
  lt = tm + halo
  roll_jnp = _roll_is_jnp_convention() if max_off else True

  ck = min(ck_max, _round_up(c, 8))
  n_k = _cdiv(c, ck)
  ckp = n_k * ck
  cout_p = _round_up(cout, 8)

  # Zero-pad channels & lanes, then build per-tile haloed windows (the only duplication
  # left is the halo: ~halo/tm extra bytes instead of the previous 9x im2col taps).
  xp = jnp.pad(x_rows, ((0, ckp - c), (0, mp + halo - lx)))
  x_tiles = jnp.stack(
      [lax.slice_in_dim(xp, i * tm, i * tm + lt, axis=1) for i in range(t_tiles)],
      axis=0)                                                  # (T, ckp, lt)

  w = jnp.pad(w_taps, ((0, cout_p - cout), (0, 0), (0, ckp - c)))
  w = w.astype(compute_dtype)                                  # scale already folded in f32
  w = w.reshape(cout_p, ntaps, n_k, ck).transpose(2, 1, 0, 3)  # (n_k, ntaps, cout_p, ck)
  b = jnp.pad(bias.astype(jnp.float32), (0, cout_p - cout)).reshape(cout_p, 1)

  inputs = [x_tiles, w, b]
  in_specs = [
      pl.BlockSpec((1, ck, lt), lambda i, k: (i, k, 0)),
      pl.BlockSpec((1, ntaps, cout_p, ck), lambda i, k: (k, 0, 0, 0)),
      pl.BlockSpec((cout_p, 1), lambda i, k: (0, 0)),
  ]
  if residual is not None:
    res = jnp.pad(residual, ((0, cout_p - cout), (0, mp - residual.shape[1])))
    inputs.append(res)
    in_specs.append(pl.BlockSpec((cout_p, tm), lambda i, k: (0, i)))

  kernel = functools.partial(_convbn_kernel, tuple(offs), roll_jnp,
                             residual is not None)
  return pl.pallas_call(
      kernel,
      grid=(t_tiles, n_k),
      in_specs=in_specs,
      out_specs=pl.BlockSpec((cout_p, tm), lambda i, k: (0, i)),
      out_shape=jax.ShapeDtypeStruct((cout_p, mp), out_dtype),
      scratch_shapes=[pltpu.VMEM((cout_p, tm), jnp.float32)],
      compiler_params=pltpu.CompilerParams(
          dimension_semantics=("parallel", "arbitrary"),
          vmem_limit_bytes=_vmem_limit_bytes()),
  )(*inputs)


# -------------------------------- JAX glue ------------------------------------
def _fold_bn(bn):
  scale = bn["gamma"] * lax.rsqrt(bn["var"] + EPS)
  bias = bn["beta"] - bn["mean"] * scale
  return scale, bias


def _pad_in_flat(x4d):
  """(C,N,H,W) -> (C, N*(H+2)*(W+2)) with a zero ring (conv input layout)."""
  c = x4d.shape[0]
  return jnp.pad(x4d, ((0, 0), (0, 0), (1, 1), (1, 1))).reshape(c, -1)


def _pad_out_flat(x4d):
  """(C,N,H,W) -> (C, N*(H+2)*(W+2)) with trailing zeros (output-coordinate layout)."""
  c = x4d.shape[0]
  return jnp.pad(x4d, ((0, 0), (0, 0), (0, 2), (0, 2))).reshape(c, -1)


def _tap_offsets(w_img):
  rp = w_img + 2
  return [kh * rp + kw for kh in range(3) for kw in range(3)]


def _w3x3_taps(w_hwio, scale):
  """(3,3,Cin,Cout) HWIO -> (Cout, 9, Cin) with the BN scale folded in (f32)."""
  cin, cout = w_hwio.shape[2], w_hwio.shape[3]
  w = jnp.transpose(w_hwio.reshape(9, cin, cout), (2, 0, 1))
  return w * scale[:, None, None]


def _im2col_taps_3x3(x_cnhw, stride):
  """x: (C,N,H,W) -> taps (9*C, N*Ho*Wo) for a 3x3 conv, pad=1 (stride-2 fallback only)."""
  c, n, h, w = x_cnhw.shape
  ho = (h + 2 - 3) // stride + 1
  wo = (w + 2 - 3) // stride + 1
  xp = jnp.pad(x_cnhw, ((0, 0), (0, 0), (1, 1), (1, 1)))
  taps = []
  for kh in range(3):
    for kw in range(3):
      t = lax.slice(
          xp, (0, 0, kh, kw),
          (c, n, kh + (ho - 1) * stride + 1, kw + (wo - 1) * stride + 1),
          (1, 1, stride, stride))
      taps.append(t.reshape(c, n * ho * wo))
  return jnp.concatenate(taps, axis=0), (n, ho, wo)


def init_basic_block_params(key, input_planes, output_planes, stride,
                            identity_flag):
  keys = jax.random.split(key, 12)

  def conv_w(k, shape):  # HWIO
    fan_in = shape[0] * shape[1] * shape[2]
    return jax.random.normal(k, shape, jnp.float32) / jnp.sqrt(float(fan_in))

  def bn(kk, c):
    k1, k2, k3, k4 = jax.random.split(kk, 4)
    return dict(
        gamma=1.0 + 0.1 * jax.random.normal(k1, (c,), jnp.float32),
        beta=0.1 * jax.random.normal(k2, (c,), jnp.float32),
        mean=0.1 * jax.random.normal(k3, (c,), jnp.float32),
        var=0.5 + jax.random.uniform(k4, (c,), jnp.float32))

  params = dict(
      stride=stride,
      conv1_w=conv_w(keys[0], (3, 3, input_planes, output_planes)),
      bn1=bn(keys[1], output_planes),
      conv2_w=conv_w(keys[2], (3, 3, output_planes, output_planes)),
      bn2=bn(keys[3], output_planes),
      downsample=None)
  if identity_flag:
    params["downsample"] = dict(
        w=conv_w(keys[4], (1, 1, input_planes, output_planes)),
        bn=bn(keys[5], output_planes))
  return params


def basic_block_forward(params, x_nchw, compute_dtype=jnp.bfloat16):
  stride = params["stride"]
  cd = compute_dtype
  x_cm = jnp.transpose(x_nchw, (1, 0, 2, 3)).astype(cd)   # (Cin,N,H,W), cast early
  cin, n, h, w = x_cm.shape
  cout = params["conv1_w"].shape[-1]
  s1, b1 = _fold_bn(params["bn1"])
  s2, b2 = _fold_bn(params["bn2"])

  # ---- conv1 (3x3, stride) + bn1 + relu ----
  if stride == 1:
    ho, wo = h, w
    x_rows = _pad_in_flat(x_cm)                               # (Cin, N*(H+2)*(W+2))
    out1_f = _fused_conv_bn(x_rows, _w3x3_taps(params["conv1_w"], s1), b1,
                            _tap_offsets(w), out_dtype=cd)
    sp = (h + 2) * (w + 2)
    out1 = out1_f[:cout, :n * sp].reshape(cout, n, h + 2, w + 2)[:, :, :h, :w]
  else:
    # TODO(synk): stride-2 conv1 keeps im2col taps in XLA glue (shift trick is stride-1 only).
    taps1, (n, ho, wo) = _im2col_taps_3x3(x_cm, stride)       # (9*Cin, M), compute dtype
    w1 = (jnp.transpose(params["conv1_w"].reshape(9 * cin, cout))
          * s1[:, None])[:, None, :]                          # (Cout, 1, 9*Cin)
    out1_f = _fused_conv_bn(taps1, w1, b1, [0], out_dtype=cd)
    m = n * ho * wo
    out1 = out1_f[:cout, :m].reshape(cout, n, ho, wo)

  # ---- conv2 (3x3, stride 1) + bn2 + identity + relu (single fused kernel) ----
  offs2 = _tap_offsets(wo)
  sp2 = (ho + 2) * (wo + 2)
  z = _pad_in_flat(out1)                                      # (Cout, N*Sp2)
  w2 = _w3x3_taps(params["conv2_w"], s2)                      # (Cout, 9, Cout), f32

  if params["downsample"] is not None:
    sd, bd = _fold_bn(params["downsample"]["bn"])
    xs = x_cm[:, :, ::stride, ::stride]                       # 1x1-conv stride = subsample
    z = jnp.concatenate([z, _pad_out_flat(xs)], axis=0)       # (Cout+Cin, N*Sp2)
    wd = jnp.transpose(params["downsample"]["w"].reshape(cin, cout)) * sd[:, None]
    w_full = jnp.zeros((cout, 9, cout + cin), jnp.float32)
    w_full = w_full.at[:, :, :cout].set(w2)
    w_full = w_full.at[:, 0, cout:].set(wd)                   # identity path @ tap offset 0
    out_f = _fused_conv_bn(z, w_full, b2 + bd, offs2, out_dtype=cd)
  else:
    assert stride == 1 and cin == cout, "plain shortcut needs stride=1, Cin==Cout"
    res = _pad_out_flat(x_cm)                                 # residual in compute dtype
    out_f = _fused_conv_bn(z, w2, b2, offs2, residual=res, out_dtype=cd)

  out = out_f[:cout, :n * sp2].reshape(cout, n, ho + 2, wo + 2)[:, :, :ho, :wo]
  return jnp.transpose(out, (1, 0, 2, 3))                     # NCHW


# -------------------------------- reference ------------------------------------
def reference_forward(params, x_nchw, compute_dtype=jnp.float32):
  cast = lambda a: a.astype(compute_dtype).astype(jnp.float32)
  x = jnp.transpose(x_nchw, (0, 2, 3, 1)).astype(jnp.float32)   # NHWC
  s = params["stride"]
  dn = ("NHWC", "HWIO", "NHWC")
  hi = lax.Precision.HIGHEST

  def bn_apply(y, bn):
    sc, bi = _fold_bn(bn)
    return y * sc + bi

  out = lax.conv_general_dilated(cast(x), cast(params["conv1_w"]), (s, s),
                                 ((1, 1), (1, 1)), dimension_numbers=dn,
                                 precision=hi)
  out = jnp.maximum(bn_apply(out, params["bn1"]), 0.0)
  out = lax.conv_general_dilated(cast(out), cast(params["conv2_w"]), (1, 1),
                                 ((1, 1), (1, 1)), dimension_numbers=dn,
                                 precision=hi)
  out = bn_apply(out, params["bn2"])
  if params["downsample"] is not None:
    idn = lax.conv_general_dilated(cast(x), cast(params["downsample"]["w"]),
                                   (s, s), ((0, 0), (0, 0)),
                                   dimension_numbers=dn, precision=hi)
    idn = bn_apply(idn, params["downsample"]["bn"])
  else:
    idn = x
  out = jnp.maximum(out + idn, 0.0)
  return jnp.transpose(out, (0, 3, 1, 2))


# ----------------------------------- main ---------------------------------------
if __name__ == "__main__":
  key = jax.random.PRNGKey(0)
  kx, kp1, kp2 = jax.random.split(key, 3)
  x = jax.random.normal(kx, (2, 4, 16, 16), jnp.float32)  # NCHW

  # Case 1: stride=2, identityFlag=True (downsample folded into conv2's K loop).
  # Case 2: stride=1, identityFlag=False (plain identity shortcut).
  p1 = init_basic_block_params(kp1, 4, 8, 2, True)
  p2 = init_basic_block_params(kp2, 4, 4, 1, False)
  cases = ((p1, (2, 8, 8, 8)), (p2, (2, 4, 16, 16)))

  # f32 compute mode: tight numerical validation against the f32 reference.
  for params, shape in cases:
    y = jax.block_until_ready(basic_block_forward(params, x, jnp.float32))
    r = reference_forward(params, x, jnp.float32)
    assert y.shape == shape, y.shape
    assert jnp.allclose(y, r, atol=1e-3, rtol=1e-3), (
        "f32 mismatch", float(jnp.max(jnp.abs(y - r))))

  # bf16 fast path (MXU operands, bf16 intermediate/output stores).
  for params, shape in cases:
    y = jax.block_until_ready(basic_block_forward(params, x, jnp.bfloat16))
    r = reference_forward(params, x, jnp.bfloat16)
    assert y.shape == shape, y.shape
    yf = y.astype(jnp.float32)
    assert jnp.allclose(yf, r, atol=5e-2, rtol=5e-2), (
        "bf16 mismatch", float(jnp.max(jnp.abs(yf - r))))

  print("KERNEL_OK")
</pallas_src>

<mosaic_0001>
module attributes {stable_mosaic.version = 11 : i64} {
  func.func @_convbn_kernel(%arg0: i32, %arg1: i32, %arg2: memref<1x40x128xf32, #tpu.memory_space<vmem>>, %arg3: memref<1x1x8x40xf32, #tpu.memory_space<vmem>>, %arg4: memref<8x1xf32, #tpu.memory_space<vmem>>, %arg5: memref<8x128xf32, #tpu.memory_space<vmem>>, %arg6: memref<8x128xf32, #tpu.memory_space<vmem>>) attributes {dimension_semantics = [#tpu.dimension_semantics<parallel>, #tpu.dimension_semantics<arbitrary>], iteration_bounds = array<i64: 1, 1>, scalar_prefetch = 0 : i64, scratch_operands = 1 : i64, tpu.core_type = #tpu.core_type<tc>, window_params = [{transform_indices = @transform_0, window_bounds = array<i64: 1, 40, 128>}, {transform_indices = @transform_1, window_bounds = array<i64: 1, 1, 8, 40>}, {pipeline_mode = #tpu.pipeline_mode<synchronous>, transform_indices = @transform_2, window_bounds = array<i64: 8, 1>}, {transform_indices = @transform_3, window_bounds = array<i64: 8, 128>}]} {
    %c0_i32 = arith.constant 0 : i32
    %0 = arith.cmpi eq, %arg1, %c0_i32 : i32
    %1 = arith.extui %0 : i1 to i32
    %c0_i32_0 = arith.constant 0 : i32
    %2 = arith.cmpi ne, %1, %c0_i32_0 : i32
    scf.if %2 {
      %cst_13 = arith.constant 0.000000e+00 : f32
      %14 = vector.broadcast %cst_13 : f32 to vector<8x128xf32>
      %c0_14 = arith.constant 0 : index
      %c0_15 = arith.constant 0 : index
      %15 = vector.load %arg6[%c0_14, %c0_15] : memref<8x128xf32, #tpu.memory_space<vmem>>, vector<8x128xf32>
      tpu.vector_store %arg6[%c0_14, %c0_15], %14 {strides = array<i32>} : memref<8x128xf32, #tpu.memory_space<vmem>>, vector<8x128xf32>,
    } else {
    }
    %c0 = arith.constant 0 : index
    %c0_1 = arith.constant 0 : index
    %c0_2 = arith.constant 0 : index
    %3 = vector.load %arg2[%c0, %c0_1, %c0_2] : memref<1x40x128xf32, #tpu.memory_space<vmem>>, vector<1x40x128xf32>
    %4 = vector.shape_cast %3 : vector<1x40x128xf32> to vector<40x128xf32>
    %c0_3 = arith.constant 0 : index
    %c0_4 = arith.constant 0 : index
    %c0_5 = arith.constant 0 : index
    %c0_6 = arith.constant 0 : index
    %5 = vector.load %arg3[%c0_3, %c0_4, %c0_5, %c0_6] : memref<1x1x8x40xf32, #tpu.memory_space<vmem>>, vector<1x1x8x40xf32>
    %6 = vector.shape_cast %5 : vector<1x1x8x40xf32> to vector<8x40xf32>
    %cst = arith.constant dense<0.000000e+00> : vector<8x128xf32>
    %7 = tpu.matmul %6, %4, %cst {dimension_numbers = #tpu.dot_dimension_numbers<[1], [0], [0], [1], [0, 0, 1, 1], [], []>} : vector<8x40xf32>, vector<40x128xf32>, vector<8x128xf32> -> vector<8x128xf32>
    %c0_7 = arith.constant 0 : index
    %c0_8 = arith.constant 0 : index
    %8 = vector.load %arg6[%c0_7, %c0_8] : memref<8x128xf32, #tpu.memory_space<vmem>>, vector<8x128xf32>
    %9 = arith.addf %8, %7 : vector<8x128xf32>
    %c0_9 = arith.constant 0 : index
    %c0_10 = arith.constant 0 : index
    %10 = vector.load %arg6[%c0_9, %c0_10] : memref<8x128xf32, #tpu.memory_space<vmem>>, vector<8x128xf32>
    tpu.vector_store %arg6[%c0_9, %c0_10], %9 {strides = array<i32>} : memref<8x128xf32, #tpu.memory_space<vmem>>, vector<8x128xf32>,
    %c0_i32_11 = arith.constant 0 : i32
    %11 = arith.cmpi eq, %arg1, %c0_i32_11 : i32
    %12 = arith.extui %11 : i1 to i32
    %c0_i32_12 = arith.constant 0 : i32
    %13 = arith.cmpi ne, %12, %c0_i32_12 : i32
    scf.if %13 {
      %c0_13 = arith.constant 0 : index
      %c0_14 = arith.constant 0 : index
      %14 = vector.load %arg6[%c0_13, %c0_14] : memref<8x128xf32, #tpu.memory_space<vmem>>, vector<8x128xf32>
      %c0_15 = arith.constant 0 : index
      %c0_16 = arith.constant 0 : index
      %15 = vector.load %arg4[%c0_15, %c0_16] : memref<8x1xf32, #tpu.memory_space<vmem>>, vector<8x1xf32>
      %16 = vector.broadcast %15 : vector<8x1xf32> to vector<8x128xf32>
      %17 = arith.addf %14, %16 : vector<8x128xf32>
      %cst_17 = arith.constant 0.000000e+00 : f32
      %18 = vector.broadcast %cst_17 : f32 to vector<8x128xf32>
      %19 = arith.maximumf %17, %18 : vector<8x128xf32>
      %c0_18 = arith.constant 0 : index
      %c0_19 = arith.constant 0 : index
      %20 = vector.load %arg5[%c0_18, %c0_19] : memref<8x128xf32, #tpu.memory_space<vmem>>, vector<8x128xf32>
      tpu.vector_store %arg5[%c0_18, %c0_19], %19 {strides = array<i32>} : memref<8x128xf32, #tpu.memory_space<vmem>>, vector<8x128xf32>,
    } else {
    }
    return
  }
  func.func @transform_0(%arg0: i32, %arg1: i32) -> (i32, i32, i32) {
    %c0_i32 = arith.constant 0 : i32
    %c0_i32_0 = arith.constant 0 : i32
    return %arg0, %arg1, %c0_i32 : i32, i32, i32
  }
  func.func @transform_1(%arg0: i32, %arg1: i32) -> (i32, i32, i32, i32) {
    %c0_i32 = arith.constant 0 : i32
    %c0_i32_0 = arith.constant 0 : i32
    %c0_i32_1 = arith.constant 0 : i32
    %c0_i32_2 = arith.constant 0 : i32
    return %arg1, %c0_i32, %c0_i32_0, %c0_i32_1 : i32, i32, i32, i32
  }
  func.func @transform_2(%arg0: i32, %arg1: i32) -> (i32, i32) {
    %c0_i32 = arith.constant 0 : i32
    %c0_i32_0 = arith.constant 0 : i32
    %c0_i32_1 = arith.constant 0 : i32
    return %c0_i32, %c0_i32_0 : i32, i32
  }
  func.func @transform_3(%arg0: i32, %arg1: i32) -> (i32, i32) {
    %c0_i32 = arith.constant 0 : i32
    %c0_i32_0 = arith.constant 0 : i32
    return %c0_i32, %arg0 : i32, i32
  }
}

</mosaic_0001>

<llo_original>
// kernel: tpu_custom_call.1
$region0: #{tpu_custom_call.1}
  #allocation0 [shape = 'u32[]', space=smem, size = 0x4, offset = 0x4, fixed_abs, tag = 'smem constant byte address 0x4 - core index']
  #allocation1 [shape = 'u32[144,128]{1,0:T(1,128)}', space=vmem, size = 0x12000, scoped, tag = 'internal scratch']
  #allocation2 [shape = 'f32[8,128]{1,0:T(8,128)}', space=vmem, size = 0x1000, scoped, tag = 'scratch operand']
  %s0 = inlined_call_operand.hbm [shape: f32[1,40,128], index: 0, kind: input, shape index: {}]
  %s1 = inlined_call_operand.vmem [shape: f32[1,1,8,40], index: 1, kind: input, shape index: {}]
  %s2 = inlined_call_operand.vmem [shape: f32[8,1], index: 2, kind: input, shape index: {}]
  %s3 = inlined_call_operand.hbm [shape: f32[8,128], index: 3, kind: output, shape index: {}]
  %s4 = sld [smem:[#allocation0]]
  $region34: #{tpu_custom_call.1} parent=0
    _
  %s6 = ssub.s32 1, %s4
  %s7 = scalar_select 0, %s6, %s4
  $region1: #{tpu_custom_call.1} parent=0
    #allocation3 [shape = 'u8[20480]{0}', space=vmem, size = 0x5000, scoped, tag = 'input window, operand 0, single buffered']
    #allocation4 [shape = 's32[1]{0}', space=sflag, size = 0x4, scoped, tag = 'scoped memory for tpu_custom_call.1']
    #allocation5 [shape = 's32[1]{0}', space=sflag, size = 0x4, scoped, tag = 'scoped memory for tpu_custom_call.1']
    #allocation6 [shape = 'u8[4096]{0}', space=vmem, size = 0x1000, scoped, tag = 'output window, operand 0, single buffered']
    %8 = vsyncpa [#allocation4], 0
    %9 = vsyncpa [#allocation5], 0
    // Predicated region
    $region2: #{tpu_custom_call.1} parent=1 // pred_check
      _
    $region3: #{tpu_custom_call.1} parent=1 // pred_check_branch
      %11 = sbr.rel (0) target = $region5
    $region4: #{tpu_custom_call.1} parent=1 // pred_region
      %s13 = ssub.s32 640, 640
      %14 = vsyncadd [#allocation4], %s13
      %s15 = sshll.u32 [#allocation3], 4
      %s16 = int_to_ptr.vmem [resolvable:$true] %s15
      %21 = dma.hbm_to_vmem [thread:$0]  %s0, 640, %s16, [#allocation4], 128, 128, 8
    $region5: #{tpu_custom_call.1} parent=1 // pred_fallthru
      _
    // Predicated region
    $region6: #{tpu_custom_call.1} parent=1 // pred_check
      _
    $region7: #{tpu_custom_call.1} parent=1 // pred_check_branch
      %23 = sbr.rel (0) target = $region9
    $region8: #{tpu_custom_call.1} parent=1 // pred_region
      _
    $region9: #{tpu_custom_call.1} parent=1 // pred_fallthru
      _
    // Predicated region
    $region10: #{tpu_custom_call.1} parent=1 // pred_check
      _
    $region11: #{tpu_custom_call.1} parent=1 // pred_check_branch
      %25 = sbr.rel (0) target = $region13
    $region12: #{tpu_custom_call.1} parent=1 // pred_region
      _
    $region13: #{tpu_custom_call.1} parent=1 // pred_fallthru
      _
    // Predicated region
    $region14: #{tpu_custom_call.1} parent=1 // pred_check
      _
    $region15: #{tpu_custom_call.1} parent=1 // pred_check_branch
      %27 = sbr.rel (0) target = $region17
    $region16: #{tpu_custom_call.1} parent=1 // pred_region
      %28 = dma.done [#allocation4], 640
    $region17: #{tpu_custom_call.1} parent=1 // pred_fallthru
      _
    %p29 = scmp.eq.s32.totalorder 0, 0
    // Predicated region
    $region18: #{tpu_custom_call.1} parent=1 // pred_check
      %p30 = pneg %p29
    $region19: #{tpu_custom_call.1} parent=1 // pred_check_branch
      %32 = sbr.rel (%p30) target = $region21
    $region20: #{tpu_custom_call.1} parent=1 // pred_region
      %33 = vst [vmem:[#allocation2] sm:$0xff] 0.0
    $region21: #{tpu_custom_call.1} parent=1 // pred_fallthru
      _
    %v34 = vld [vmem:[#allocation3] sm:$0xff]
    %v35 = vld [vmem:[#allocation3 + $0x8] sm:$0xff]
    %v36 = vld [vmem:[#allocation3 + $0x10] sm:$0xff]
    %v37 = vld [vmem:[#allocation3 + $0x18] sm:$0xff]
    %v38 = vld [vmem:[#allocation3 + $0x20] sm:$0xff]
    %v39 = vld [vmem:[%s1] sm:$0xff]
    %vm40 = vcmask 326656
    %v42 = vsel %vm40, %v39, 0
    %44 = vmatprep.subr.mxu0 0.0
    %45 = vmatpush1.msra.mxu0 %v34
    %46 = vmatprep.subr.mxu0 0.0
    %47 = vmatpush1.msra.mxu0 %v35
    %48 = vmatprep.subr.mxu0 0.0
    %49 = vmatpush1.msra.mxu0 %v36
    %50 = vmatprep.subr.mxu0 0.0
    %51 = vmatpush1.msra.mxu0 %v37
    %52 = vmatprep.subr.mxu0 0.0
    %53 = vmatpush1.msra.mxu0 %v38
    %54 = vmatprep.subr.mxu0 0.0
    %55 = vmatpush1.msra.mxu0 0.0
    %56 = vmatprep.subr.mxu0 0.0
    %57 = vmatpush1.msra.mxu0 0.0
    %58 = vmatprep.subr.mxu0 0.0
    %59 = vmatpush1.msra.mxu0 0.0
    %60 = vmatprep.subr.mxu0 0.0
    %61 = vmatpush1.msra.mxu0 0.0
    %62 = vmatprep.subr.mxu0 0.0
    %63 = vmatpush1.msra.mxu0 0.0
    %64 = vmatprep.subr.mxu0 0.0
    %65 = vmatpush1.msra.mxu0 0.0
    %66 = vmatprep.subr.mxu0 0.0
    %67 = vmatpush1.msra.mxu0 0.0
    %68 = vmatprep.subr.mxu0 0.0
    %69 = vmatpush1.msra.mxu0 0.0
    %70 = vmatprep.subr.mxu0 0.0
    %71 = vmatpush1.msra.mxu0 0.0
    %72 = vmatprep.subr.mxu0 0.0
    %73 = vmatpush1.msra.mxu0 0.0
    %74 = vmatprep.subr.mxu0 0.0
    %75 = vmatpush1.msra.mxu0 0.0
    %76 = vmatprep.subr.mxu0 0.0
    %77 = vmatpush1.msra.mxu0 0.0
    %78 = vmatprep.subr.mxu0 0.0
    %79 = vmatpush1.msra.mxu0 0.0
    %80 = vmatprep.subr.mxu0 0.0
    %81 = vmatpush1.msra.mxu0 0.0
    %82 = vmatprep.subr.mxu0 0.0
    %83 = vmatpush1.msra.mxu0 0.0
    %84 = vmatprep.subr.mxu0 0.0
    %85 = vmatpush1.msra.mxu0 0.0
    %86 = vmatprep.subr.mxu0 0.0
    %87 = vmatpush1.msra.mxu0 0.0
    %88 = vmatprep.subr.mxu0 0.0
    %89 = vmatpush1.msra.mxu0 0.0
    %90 = vmatprep.subr.mxu0 0.0
    %91 = vmatpush1.msra.mxu0 0.0
    %92 = vmatprep.subr.mxu0 0.0
    %93 = vmatpush1.msra.mxu0 0.0
    %94 = vmatprep.subr.mxu0 0.0
    %95 = vmatpush1.msra.mxu0 0.0
    %96 = vmatprep.subr.mxu0 0.0
    %97 = vmatpush1.msra.mxu0 0.0
    %98 = vmatprep.subr.mxu0 0.0
    %99 = vmatpush1.msra.mxu0 0.0
    %100 = vmatprep.subr.mxu0 0.0
    %101 = vmatpush1.msra.mxu0 0.0
    %102 = vmatprep.subr.mxu0 0.0
    %103 = vmatpush1.msra.mxu0 0.0
    %104 = vmatprep.subr.mxu0 0.0
    %105 = vmatpush1.msra.mxu0 0.0
    %106 = vmatprep.subr.mxu0 0.0
    %107 = vmatpush1.msra.mxu0 0.0
    %108 = vmatprep.mubr.f32.mxu0 0.0
    %109 = vmatmul.mubr.f32.gmra.mrb[0].mxu0 %v42
    %v110 = vpop.f32.mrb[0].mxu0
    %v111 = vadd.f32 0.0, %v110
    %v112 = vpop.f32.mrb[0].mxu0
    %113 = vdwg.mxu0
    %v114 = vld [vmem:[#allocation2] sm:$0xff]
    %v115 = vadd.f32 %v114, %v111
    %116 = vst [vmem:[#allocation2] sm:$0xff] %v115
    // Predicated region
    $region22: #{tpu_custom_call.1} parent=1 // pred_check
      %p117 = pneg %p29
    $region23: #{tpu_custom_call.1} parent=1 // pred_check_branch
      %119 = sbr.rel (%p117) target = $region25
    $region24: #{tpu_custom_call.1} parent=1 // pred_region
      %v120 = vld [vmem:[#allocation2] sm:$0xff]
      %v121 = vld [vmem:[%s2] sm:$0xff]
      %123 = vset.pattern.permute.xlu0 0
      %124 = vperm.xlu0 %123, %v121
      %v125 = vpop.permute.xlu0 %124
      %v127 = vadd.f32 %v120, %v125
      %v128 = vmax.f32 %v127, 0.0
      %129 = vst [vmem:[#allocation6] sm:$0xff] %v128
    $region25: #{tpu_custom_call.1} parent=1 // pred_fallthru
      _
    // Predicated region
    $region26: #{tpu_custom_call.1} parent=1 // pred_check
      _
    $region27: #{tpu_custom_call.1} parent=1 // pred_check_branch
      %131 = sbr.rel (0) target = $region29
    $region28: #{tpu_custom_call.1} parent=1 // pred_region
      %s133 = ssub.s32 128, 128
      %134 = vsyncadd [#allocation5], %s133
      %s136 = sshll.u32 [#allocation6], 4
      %s137 = int_to_ptr.vmem [resolvable:$true] %s136
      %139 = dma.vmem_to_hbm [thread:$0]  %s137, 128, %s3, [#allocation5]
    $region29: #{tpu_custom_call.1} parent=1 // pred_fallthru
      _
    // Predicated region
    $region30: #{tpu_custom_call.1} parent=1 // pred_check
      _
    $region31: #{tpu_custom_call.1} parent=1 // pred_check_branch
      %141 = sbr.rel (0) target = $region33
    $region32: #{tpu_custom_call.1} parent=1 // pred_region
      %142 = dma.done [#allocation5], 128
    $region33: #{tpu_custom_call.1} parent=1 // pred_fallthru
      _
    %143 = vsyncpa [#allocation4], 1
    %144 = vsyncpa [#allocation5], 1

</llo_original>
